<compile_context>
chip_gen: v6e
topology: v6e:2x2x1
jax: 0.10.0
libtpu: 0.0.40
codegen_flags: <defaults>
</compile_context>

<pallas_src>
import numpy as np
import jax
import jax.numpy as jnp
from jax.experimental import pallas as pl
from jax.experimental.pallas import tpu as pltpu

MIN_V = 0.016
MAX_V = 12.005
INV_SQRT2 = 1.0 / np.sqrt(2.0)

C_IN, C_MID, C_OUT = 2, 4, 2
KH = KW = 2
STRIDE = 2
PAD = 2

K_FEAT = C_IN * KH * KW   # 8 conv receptive-field features (true contraction dim, no padding)
OUT_ROWS = 8              # 2 valid output channels padded to 8 sublanes (dense vregs)
TILE_M = 32768            # lane-dim rows per grid step (clamped to the problem size)


def _fused_kernel(w_ref, b_ref, p_ref, o_ref):
    # w_ref: (OUT_ROWS, K_FEAT)  fused conv->1x1 convT weight (transposed), rows 2..7 zero
    # b_ref: (OUT_ROWS, 1)       fused bias
    # p_ref: (K_FEAT, tile_m)    im2col patches with M on the lane axis
    # o_ref: (OUT_ROWS, tile_m)  lane-dense output (rows 0..1 valid)
    v = jnp.dot(w_ref[...], p_ref[...], preferred_element_type=jnp.float32)
    v = jnp.maximum(v + b_ref[...], MIN_V)                        # bias + clamp_min
    v = jnp.minimum(v, MAX_V)                                     # clamp_max
    o_ref[...] = 0.5 * v * (1.0 + jax.lax.erf(v * INV_SQRT2))     # exact GELU


def _round_up(x, m):
    return ((x + m - 1) // m) * m


@jax.jit
def model_forward(x, w_conv, b_conv, w_convt, b_convt):
    """x: (N, 2, H, W) NCHW float32 (H, W even) -> (N, 2, H//2, W//2) NCHW float32."""
    N, C, H, W = x.shape

    # ConvTranspose padding=1 crops the 1-wide border of the conv's (H/2+2, W/2+2) output.
    # The surviving interior positions' receptive fields cover exactly the UNPADDED input,
    # and stride == kernel, so im2col is a pure reshape/transpose (no jnp.pad of x at all).
    OH, OW = H // STRIDE, W // STRIDE
    M = N * OH * OW

    tile_m = min(TILE_M, _round_up(-(-M // 2), 128))   # >=2 grid steps once M is large (v7x)
    M_pad = _round_up(M, tile_m)

    # (K_FEAT, M) patch matrix; feature order (c, kh, kw) matches Conv2d weight layout.
    patches_t = (x.reshape(N, C, OH, KH, OW, KW)
                  .transpose(1, 3, 5, 0, 2, 4)
                  .reshape(K_FEAT, M))
    patches_t = jnp.pad(patches_t, ((0, 0), (0, M_pad - M)))

    # Fuse the two linear layers:  y = (W2^T W1) p + (b1 W2 + b2)
    w1 = w_conv.reshape(C_MID, K_FEAT)                 # (4, 8)
    w2 = w_convt.reshape(C_MID, C_OUT)                 # (4, 2)
    wft = jnp.zeros((OUT_ROWS, K_FEAT), jnp.float32).at[:C_OUT].set(w2.T @ w1)
    bf = jnp.zeros((OUT_ROWS, 1), jnp.float32).at[:C_OUT, 0].set(b_conv @ w2 + b_convt)

    out = pl.pallas_call(
        _fused_kernel,
        out_shape=jax.ShapeDtypeStruct((OUT_ROWS, M_pad), jnp.float32),
        grid_spec=pltpu.PrefetchScalarGridSpec(
            num_scalar_prefetch=0,
            grid=(M_pad // tile_m,),
            in_specs=[pl.BlockSpec((OUT_ROWS, K_FEAT), lambda i: (0, 0)),
                      pl.BlockSpec((OUT_ROWS, 1), lambda i: (0, 0)),
                      pl.BlockSpec((K_FEAT, tile_m), lambda i: (0, i))],
            out_specs=pl.BlockSpec((OUT_ROWS, tile_m), lambda i: (0, i)),
        ),
        compiler_params=pltpu.CompilerParams(
            dimension_semantics=("parallel",)),
    )(wft, bf, patches_t)

    # (2, M) -> (N, 2, OH, OW); no extra crop needed (only interior positions were computed).
    return out[:C_OUT, :M].reshape(C_OUT, N, OH, OW).transpose(1, 0, 2, 3)


def reference_forward(x, w_conv, b_conv, w_convt, b_convt):
    """Pure-JAX reference for validation."""
    v1 = jax.lax.conv_general_dilated(
        x, w_conv, window_strides=(STRIDE, STRIDE),
        padding=((PAD, PAD), (PAD, PAD)),
        dimension_numbers=("NCHW", "OIHW", "NCHW"),
    ) + b_conv[None, :, None, None]
    v2 = jnp.einsum("nchw,cd->ndhw", v1, w_convt.reshape(C_MID, C_OUT))
    v2 = v2 + b_convt[None, :, None, None]
    v2 = v2[:, :, 1:-1, 1:-1]                                     # ConvTranspose padding=1
    v3 = jnp.clip(v2, MIN_V, MAX_V)
    return 0.5 * v3 * (1.0 + jax.lax.erf(v3 * INV_SQRT2))


if __name__ == "__main__":
    key = jax.random.PRNGKey(0)
    kx, k1, k2, k3, k4 = jax.random.split(key, 5)

    # deterministic synthetic inputs / parameters (PyTorch-shaped)
    x = jax.random.normal(kx, (1, C_IN, 10, 10), jnp.float32)
    fan1 = C_IN * KH * KW
    w_conv = jax.random.uniform(k1, (C_MID, C_IN, KH, KW), jnp.float32,
                                -1.0 / np.sqrt(fan1), 1.0 / np.sqrt(fan1))
    b_conv = jax.random.uniform(k2, (C_MID,), jnp.float32,
                                -1.0 / np.sqrt(fan1), 1.0 / np.sqrt(fan1))
    fan2 = C_MID
    w_convt = jax.random.uniform(k3, (C_MID, C_OUT, 1, 1), jnp.float32,
                                 -1.0 / np.sqrt(fan2), 1.0 / np.sqrt(fan2))
    b_convt = jax.random.uniform(k4, (C_OUT,), jnp.float32,
                                 -1.0 / np.sqrt(fan2), 1.0 / np.sqrt(fan2))

    y = jax.block_until_ready(model_forward(x, w_conv, b_conv, w_convt, b_convt))

    y_ref = reference_forward(x, w_conv, b_conv, w_convt, b_convt)
    np.testing.assert_allclose(np.asarray(y), np.asarray(y_ref), atol=1e-5, rtol=1e-5)
    assert y.shape == (1, C_OUT, 5, 5)
    print("KERNEL_OK")
</pallas_src>

<mosaic_0001>
module attributes {stable_mosaic.version = 11 : i64} {
  func.func @_fused_kernel(%arg0: i32, %arg1: memref<8x8xf32, #tpu.memory_space<vmem>>, %arg2: memref<8x1xf32, #tpu.memory_space<vmem>>, %arg3: memref<8x128xf32, #tpu.memory_space<vmem>>, %arg4: memref<8x128xf32, #tpu.memory_space<vmem>>) attributes {dimension_semantics = [#tpu.dimension_semantics<parallel>], iteration_bounds = array<i64: 1>, scalar_prefetch = 0 : i64, scratch_operands = 0 : i64, tpu.core_type = #tpu.core_type<tc>, window_params = [{pipeline_mode = #tpu.pipeline_mode<synchronous>, transform_indices = @transform_0, window_bounds = array<i64: 8, 8>}, {pipeline_mode = #tpu.pipeline_mode<synchronous>, transform_indices = @transform_1, window_bounds = array<i64: 8, 1>}, {transform_indices = @transform_2, window_bounds = array<i64: 8, 128>}, {transform_indices = @transform_3, window_bounds = array<i64: 8, 128>}]} {
    %c0 = arith.constant 0 : index
    %c0_0 = arith.constant 0 : index
    %0 = vector.load %arg1[%c0, %c0_0] : memref<8x8xf32, #tpu.memory_space<vmem>>, vector<8x8xf32>
    %c0_1 = arith.constant 0 : index
    %c0_2 = arith.constant 0 : index
    %1 = vector.load %arg3[%c0_1, %c0_2] : memref<8x128xf32, #tpu.memory_space<vmem>>, vector<8x128xf32>
    %cst = arith.constant dense<0.000000e+00> : vector<8x128xf32>
    %2 = tpu.matmul %0, %1, %cst {dimension_numbers = #tpu.dot_dimension_numbers<[1], [0], [0], [1], [0, 0, 1, 1], [], []>} : vector<8x8xf32>, vector<8x128xf32>, vector<8x128xf32> -> vector<8x128xf32>
    %c0_3 = arith.constant 0 : index
    %c0_4 = arith.constant 0 : index
    %3 = vector.load %arg2[%c0_3, %c0_4] : memref<8x1xf32, #tpu.memory_space<vmem>>, vector<8x1xf32>
    %4 = vector.broadcast %3 : vector<8x1xf32> to vector<8x128xf32>
    %5 = arith.addf %2, %4 : vector<8x128xf32>
    %cst_5 = arith.constant 1.600000e-02 : f32
    %6 = vector.broadcast %cst_5 : f32 to vector<8x128xf32>
    %7 = arith.maximumf %5, %6 : vector<8x128xf32>
    %cst_6 = arith.constant 1.200500e+01 : f32
    %8 = vector.broadcast %cst_6 : f32 to vector<8x128xf32>
    %9 = arith.minimumf %7, %8 : vector<8x128xf32>
    %cst_7 = arith.constant 5.000000e-01 : f32
    %10 = vector.broadcast %cst_7 : f32 to vector<8x128xf32>
    %11 = arith.mulf %10, %9 : vector<8x128xf32>
    %cst_8 = arith.constant 0.707106769 : f32
    %12 = vector.broadcast %cst_8 : f32 to vector<8x128xf32>
    %13 = arith.mulf %9, %12 : vector<8x128xf32>
    %14 = math.erf %13 : vector<8x128xf32>
    %cst_9 = arith.constant 1.000000e+00 : f32
    %15 = vector.broadcast %cst_9 : f32 to vector<8x128xf32>
    %16 = arith.addf %15, %14 : vector<8x128xf32>
    %17 = arith.mulf %11, %16 : vector<8x128xf32>
    %c0_10 = arith.constant 0 : index
    %c0_11 = arith.constant 0 : index
    %18 = vector.load %arg4[%c0_10, %c0_11] : memref<8x128xf32, #tpu.memory_space<vmem>>, vector<8x128xf32>
    tpu.vector_store %arg4[%c0_10, %c0_11], %17 {strides = array<i32>} : memref<8x128xf32, #tpu.memory_space<vmem>>, vector<8x128xf32>,
    return
  }
  func.func @transform_0(%arg0: i32) -> (i32, i32) {
    %c0_i32 = arith.constant 0 : i32
    %c0_i32_0 = arith.constant 0 : i32
    %c0_i32_1 = arith.constant 0 : i32
    return %c0_i32, %c0_i32_0 : i32, i32
  }
  func.func @transform_1(%arg0: i32) -> (i32, i32) {
    %c0_i32 = arith.constant 0 : i32
    %c0_i32_0 = arith.constant 0 : i32
    %c0_i32_1 = arith.constant 0 : i32
    return %c0_i32, %c0_i32_0 : i32, i32
  }
  func.func @transform_2(%arg0: i32) -> (i32, i32) {
    %c0_i32 = arith.constant 0 : i32
    %c0_i32_0 = arith.constant 0 : i32
    return %c0_i32, %arg0 : i32, i32
  }
  func.func @transform_3(%arg0: i32) -> (i32, i32) {
    %c0_i32 = arith.constant 0 : i32
    %c0_i32_0 = arith.constant 0 : i32
    return %c0_i32, %arg0 : i32, i32
  }
}

</mosaic_0001>

<llo_original>
// kernel: model_forward.1
$region0: #{model_forward.1}
  #allocation0 [shape = 'u32[]', space=smem, size = 0x4, offset = 0x4, fixed_abs, tag = 'smem constant byte address 0x4 - core index']
  #allocation1 [shape = 'u32[144,128]{1,0:T(1,128)}', space=vmem, size = 0x12000, scoped, tag = 'internal scratch']
  %s0 = inlined_call_operand.vmem [shape: f32[8,8], index: 0, kind: input, shape index: {}]
  %s1 = inlined_call_operand.vmem [shape: f32[8,1], index: 1, kind: input, shape index: {}]
  %s2 = inlined_call_operand.vmem [shape: f32[8,128], index: 2, kind: input, shape index: {}]
  %s3 = inlined_call_operand.vmem [shape: f32[8,128], index: 3, kind: output, shape index: {}]
  %s4 = sld [smem:[#allocation0]]
  $region22: #{model_forward.1} parent=0
    _
  %s6 = ssub.s32 1, %s4
  %s7 = scalar_select 0, %s6, %s4
  // Predicated region
  $region2: #{model_forward.1} parent=0 // pred_check
    _
  $region3: #{model_forward.1} parent=0 // pred_check_branch
    %9 = sbr.rel (0) target = $region5
  $region4: #{model_forward.1} parent=0 // pred_region
    _
  $region5: #{model_forward.1} parent=0 // pred_fallthru
    _
  // Predicated region
  $region6: #{model_forward.1} parent=0 // pred_check
    _
  $region7: #{model_forward.1} parent=0 // pred_check_branch
    %11 = sbr.rel (0) target = $region9
  $region8: #{model_forward.1} parent=0 // pred_region
    _
  $region9: #{model_forward.1} parent=0 // pred_fallthru
    _
  // Predicated region
  $region10: #{model_forward.1} parent=0 // pred_check
    _
  $region11: #{model_forward.1} parent=0 // pred_check_branch
    %13 = sbr.rel (0) target = $region13
  $region12: #{model_forward.1} parent=0 // pred_region
    _
  $region13: #{model_forward.1} parent=0 // pred_fallthru
    _
  %v14 = vld [vmem:[%s0] sm:$0xff]
  %v15 = vld [vmem:[%s2] sm:$0xff]
  %v16 = vld [vmem:[%s1] sm:$0xff]
  %18 = vset.pattern.permute.xlu0 0
  %19 = vperm.xlu0 %18, %v16
  %v20 = vpop.permute.xlu0 %19
  %vm22 = vcmask 64512
  %v24 = vsel %vm22, %v14, 0
  %26 = vmatprep.subr.mxu0 0.0
  %27 = vmatpush1.msra.mxu0 0.0
  %28 = vmatprep.subr.mxu0 0.0
  %29 = vmatpush1.msra.mxu0 0.0
  %30 = vmatprep.subr.mxu0 0.0
  %31 = vmatpush1.msra.mxu0 0.0
  %32 = vmatprep.subr.mxu0 0.0
  %33 = vmatpush1.msra.mxu0 0.0
  %34 = vmatprep.subr.mxu0 0.0
  %35 = vmatpush1.msra.mxu0 0.0
  %36 = vmatprep.subr.mxu0 0.0
  %37 = vmatpush1.msra.mxu0 0.0
  %38 = vmatprep.subr.mxu0 0.0
  %39 = vmatpush1.msra.mxu0 0.0
  %40 = vmatprep.subr.mxu0 0.0
  %41 = vmatpush1.msra.mxu0 0.0
  %42 = vmatprep.subr.mxu0 0.0
  %43 = vmatpush1.msra.mxu0 0.0
  %44 = vmatprep.subr.mxu0 0.0
  %45 = vmatpush1.msra.mxu0 0.0
  %46 = vmatprep.subr.mxu0 0.0
  %47 = vmatpush1.msra.mxu0 0.0
  %48 = vmatprep.subr.mxu0 0.0
  %49 = vmatpush1.msra.mxu0 0.0
  %50 = vmatprep.subr.mxu0 0.0
  %51 = vmatpush1.msra.mxu0 0.0
  %52 = vmatprep.subr.mxu0 0.0
  %53 = vmatpush1.msra.mxu0 0.0
  %54 = vmatprep.subr.mxu0 0.0
  %55 = vmatpush1.msra.mxu0 0.0
  %56 = vmatprep.subr.mxu0 0.0
  %57 = vmatpush1.msra.mxu0 %v15
  %58 = vmatprep.subr.mxu0 0.0
  %59 = vmatpush2.msra.mxu0 0.0
  %60 = vmatprep.subr.mxu0 0.0
  %61 = vmatpush2.msra.mxu0 0.0
  %62 = vmatprep.subr.mxu0 0.0
  %63 = vmatpush2.msra.mxu0 0.0
  %64 = vmatprep.subr.mxu0 0.0
  %65 = vmatpush2.msra.mxu0 0.0
  %66 = vmatprep.subr.mxu0 0.0
  %67 = vmatpush2.msra.mxu0 0.0
  %68 = vmatprep.subr.mxu0 0.0
  %69 = vmatpush2.msra.mxu0 0.0
  %70 = vmatprep.subr.mxu0 0.0
  %71 = vmatpush2.msra.mxu0 0.0
  %72 = vmatprep.subr.mxu0 0.0
  %73 = vmatpush2.msra.mxu0 0.0
  %74 = vmatprep.subr.mxu0 0.0
  %75 = vmatpush2.msra.mxu0 0.0
  %76 = vmatprep.subr.mxu0 0.0
  %77 = vmatpush2.msra.mxu0 0.0
  %78 = vmatprep.subr.mxu0 0.0
  %79 = vmatpush2.msra.mxu0 0.0
  %80 = vmatprep.subr.mxu0 0.0
  %81 = vmatpush2.msra.mxu0 0.0
  %82 = vmatprep.subr.mxu0 0.0
  %83 = vmatpush2.msra.mxu0 0.0
  %84 = vmatprep.subr.mxu0 0.0
  %85 = vmatpush2.msra.mxu0 0.0
  %86 = vmatprep.subr.mxu0 0.0
  %87 = vmatpush2.msra.mxu0 0.0
  %88 = vmatprep.subr.mxu0 0.0
  %89 = vmatpush2.msra.mxu0 0.0
  %90 = vmatprep.mubr.f32.mxu0 0.0
  %91 = vmatmul.mubr.f32.gmra.mxu0 %v24
  %v92 = vpop.f32.mrf.mxu0
  %v93 = vadd.f32 %v20, %v92
  %v94 = vpop.f32.mrf.mxu0
  %95 = vdwg.mxu0
  %v96 = vmax.f32 %v93, 0.016
  %v97 = vmin.f32 %v96, 12.005
  %v98 = vmul.f32 %v97, 0.5
  %v99 = vmul.f32 %v97, 0.70710677
  %v100 = verf.f32.pop %v99
  %v101 = vadd.f32 %v100, 1.0
  %v102 = vmul.f32 %v98, %v101
  %103 = vst [vmem:[%s3] sm:$0xff] %v102
  // Predicated region
  $region14: #{model_forward.1} parent=0 // pred_check
    _
  $region15: #{model_forward.1} parent=0 // pred_check_branch
    %105 = sbr.rel (0) target = $region17
  $region16: #{model_forward.1} parent=0 // pred_region
    _
  $region17: #{model_forward.1} parent=0 // pred_fallthru
    _
  // Predicated region
  $region18: #{model_forward.1} parent=0 // pred_check
    _
  $region19: #{model_forward.1} parent=0 // pred_check_branch
    %107 = sbr.rel (0) target = $region21
  $region20: #{model_forward.1} parent=0 // pred_region
    _
  $region21: #{model_forward.1} parent=0 // pred_fallthru
    _

</llo_original>
